<compile_context>
chip_gen: v7x
topology: tpu7x:2x2x1
jax: 0.10.0
libtpu: 0.0.40
codegen_flags: <defaults>
</compile_context>

<pallas_src>
import jax
import jax.numpy as jnp
from jax.experimental import pallas as pl
from jax.experimental.pallas import tpu as pltpu

INPUT_DIM = 3
HIDDEN_DIM = 64
HIDDEN_DIMS = [HIDDEN_DIM, HIDDEN_DIM, HIDDEN_DIM]
OUTPUT_DIM = 1
BN_EPS = 1e-5

MIN_TILE_B = 256    # batches <= this use a single full-array block
MAX_TILE_B = 2048   # lanes per grid step; amortizes per-step overhead


def _choose_tile_b(batch: int) -> int:
    """Lanes (batch rows) per grid step.

    Keeps at least 2 grid steps for batches > MIN_TILE_B so v7x's two
    TensorCores both get work; caps at MAX_TILE_B so VMEM stays tiny and the
    v5e 16 MiB scoped default is never approached.
    """
    if batch <= MIN_TILE_B:
        return batch                       # one full-array block (no partial-block edge)
    per_core = -(-batch // 2)              # cdiv(batch, 2)
    tile = -(-per_core // 256) * 256       # round up to a multiple of 256 lanes
    return min(MAX_TILE_B, tile)


def _mlp_kernel(x_ref, wcat_ref, w2_ref, w3_ref, wo_ref, b_ref, out_ref):
    """Feature-major MLP: activations are [features, TILE_B] (batch on lanes)."""
    x = x_ref[...]                                               # [3, T]

    # Block 1: fused (main || skip) matmul -> [128, T], BN already folded in.
    z = jnp.dot(wcat_ref[...], x, preferred_element_type=jnp.float32)
    z = z + b_ref[pl.ds(0, 2 * HIDDEN_DIM), :]                   # [128, T]
    h = jnp.maximum(z[:HIDDEN_DIM, :], 0.0) + z[HIDDEN_DIM:2 * HIDDEN_DIM, :]

    # Block 2: Linear(+folded BN) -> ReLU, identity skip.
    t = jnp.dot(w2_ref[...], h, preferred_element_type=jnp.float32)
    t = t + b_ref[pl.ds(2 * HIDDEN_DIM, HIDDEN_DIM), :]
    h = jnp.maximum(t, 0.0) + h

    # Block 3: Linear(+folded BN) -> ReLU, identity skip.
    t = jnp.dot(w3_ref[...], h, preferred_element_type=jnp.float32)
    t = t + b_ref[pl.ds(3 * HIDDEN_DIM, HIDDEN_DIM), :]
    h = jnp.maximum(t, 0.0) + h

    # Output Linear -> [1, T] (lane-dense store).
    out = jnp.dot(wo_ref[...], h, preferred_element_type=jnp.float32)
    out_ref[...] = out + b_ref[pl.ds(4 * HIDDEN_DIM, 1), :]


@jax.jit
def scatterplot_quality_regressor(x, packed):
    """x: [batch, INPUT_DIM] float32 -> [batch, OUTPUT_DIM] float32."""
    wcat, w2, w3, wo, bias = packed
    batch = x.shape[0]
    tile_b = _choose_tile_b(batch)
    n_tiles = -(-batch // tile_b)

    # Feature-major input; no zero-pad / scatter prologue.  The ragged last
    # block (if any) is handled by Pallas' masked edge-block stores.
    x_fm = x.astype(jnp.float32).T                                # [3, batch]

    const = lambda i: (0, 0)
    out_fm = pl.pallas_call(
        _mlp_kernel,
        out_shape=jax.ShapeDtypeStruct((OUTPUT_DIM, batch), jnp.float32),
        grid=(n_tiles,),
        in_specs=[
            pl.BlockSpec((INPUT_DIM, tile_b), lambda i: (0, i)),  # x tile
            pl.BlockSpec(wcat.shape, const),                      # [128, 3]
            pl.BlockSpec(w2.shape, const),                        # [64, 64]
            pl.BlockSpec(w3.shape, const),                        # [64, 64]
            pl.BlockSpec(wo.shape, const),                        # [1, 64]
            pl.BlockSpec(bias.shape, const),                      # [264, 1]
        ],
        out_specs=pl.BlockSpec((OUTPUT_DIM, tile_b), lambda i: (0, i)),
        compiler_params=pltpu.CompilerParams(
            dimension_semantics=("parallel",)),
    )(x_fm, wcat, w2, w3, wo, bias)

    # Module semantics: return [batch, output_dim].
    return out_fm.T


def fold_and_pack(params):
    """Fold eval-mode BN into the Linears and pack into kernel layout."""
    (w1, b1, g1, be1, rm1, rv1, ws1, bs1,
     w2, b2, g2, be2, rm2, rv2,
     w3, b3, g3, be3, rm3, rv3,
     wo, bo) = params

    def fold(w, b, g, be, rm, rv):
        scale = g / jnp.sqrt(rv + BN_EPS)          # [1, out]
        return w * scale, (b - rm) * scale + be    # [in, out], [1, out]

    w1f, b1f = fold(w1, b1, g1, be1, rm1, rv1)
    w2f, b2f = fold(w2, b2, g2, be2, rm2, rv2)
    w3f, b3f = fold(w3, b3, g3, be3, rm3, rv3)

    # Feature-major weights: [out_features, in_features] so h = W @ x_fm.
    wcat = jnp.concatenate([w1f.T, ws1.T], axis=0)                # [128, 3]
    w2t, w3t, wot = w2f.T, w3f.T, wo.T                            # [64,64]x2, [1,64]

    # One bias slab, column-vector layout:
    #   rows   0: 64  block-1 main | 64:128 block-1 skip
    #   rows 128:192 block-2       | 192:256 block-3 | 256 output
    bias = jnp.concatenate([b1f, bs1, b2f, b3f, bo], axis=1).T    # [257, 1]
    pad = (-bias.shape[0]) % 8
    bias = jnp.pad(bias, ((0, pad), (0, 0)))                      # [264, 1]

    f32 = lambda a: a.astype(jnp.float32)
    return (f32(wcat), f32(w2t), f32(w3t), f32(wot), f32(bias))


def init_params(key):
    """Deterministic synthetic parameters matching the module's shapes.

    BN running stats / affine params are randomized (not fresh-module defaults)
    so the host-side BN fold is actually exercised by the correctness check.
    """
    keys = iter(jax.random.split(key, 32))
    params = []

    def linear(kin, kout):
        w = (jax.random.normal(next(keys), (kin, kout), jnp.float32)
             * (1.0 / jnp.sqrt(jnp.float32(kin))))
        b = jax.random.normal(next(keys), (1, kout), jnp.float32) * 0.01
        return w, b

    def bn(dim):
        gamma = 1.0 + 0.1 * jax.random.normal(next(keys), (1, dim), jnp.float32)
        beta = 0.05 * jax.random.normal(next(keys), (1, dim), jnp.float32)
        running_mean = 0.1 * jax.random.normal(next(keys), (1, dim), jnp.float32)
        running_var = jax.random.uniform(next(keys), (1, dim), jnp.float32,
                                         minval=0.5, maxval=1.5)
        return gamma, beta, running_mean, running_var

    in_dim = INPUT_DIM
    for i, hdim in enumerate(HIDDEN_DIMS):
        w, b = linear(in_dim, hdim)
        params += [w, b]
        params += list(bn(hdim))
        if i == 0:  # in_dim != hidden_dim -> Linear skip
            ws, bs = linear(in_dim, hdim)
            params += [ws, bs]
        in_dim = hdim
    wo, bo = linear(in_dim, OUTPUT_DIM)
    params += [wo, bo]
    return params


def reference_forward(x, params):
    """Plain-JAX reference (unfolded BN, eval-mode math) for validation."""
    (w1, b1, g1, be1, rm1, rv1, ws1, bs1,
     w2, b2, g2, be2, rm2, rv2,
     w3, b3, g3, be3, rm3, rv3,
     wo, bo) = params

    def lin(h, w, b):
        return h @ w + b

    def bn_relu(h, g, be, rm, rv):
        return jnp.maximum((h - rm) * jax.lax.rsqrt(rv + BN_EPS) * g + be, 0.0)

    h = bn_relu(lin(x, w1, b1), g1, be1, rm1, rv1) + lin(x, ws1, bs1)
    h = bn_relu(lin(h, w2, b2), g2, be2, rm2, rv2) + h
    h = bn_relu(lin(h, w3, b3), g3, be3, rm3, rv3) + h
    return lin(h, wo, bo)


if __name__ == "__main__":
    key = jax.random.PRNGKey(0)
    k_x, k_x2, k_p = jax.random.split(key, 3)

    params = init_params(k_p)
    packed = fold_and_pack(params)

    # Small shape consistent with the module: [batch=8, input_dim=3].
    batch = 8
    x = jax.random.normal(k_x, (batch, INPUT_DIM), jnp.float32)
    out = jax.block_until_ready(scatterplot_quality_regressor(x, packed))
    ref = reference_forward(x, params)
    assert out.shape == (batch, OUTPUT_DIM), out.shape
    assert jnp.allclose(out, ref, atol=1e-4, rtol=1e-4), (out, ref)

    # Multi-tile path with a ragged last block (600 -> 2 steps of 512 lanes).
    batch_big = 600
    x_big = jax.random.normal(k_x2, (batch_big, INPUT_DIM), jnp.float32)
    out_big = jax.block_until_ready(scatterplot_quality_regressor(x_big, packed))
    ref_big = reference_forward(x_big, params)
    assert out_big.shape == (batch_big, OUTPUT_DIM), out_big.shape
    assert jnp.allclose(out_big, ref_big, atol=1e-4, rtol=1e-4)

    print("KERNEL_OK")
</pallas_src>

<mosaic_0001>
module attributes {stable_mosaic.version = 11 : i64} {
  func.func @_mlp_kernel(%arg0: i32, %arg1: memref<3x8xf32, #tpu.memory_space<vmem>>, %arg2: memref<128x3xf32, #tpu.memory_space<vmem>>, %arg3: memref<64x64xf32, #tpu.memory_space<vmem>>, %arg4: memref<64x64xf32, #tpu.memory_space<vmem>>, %arg5: memref<1x64xf32, #tpu.memory_space<vmem>>, %arg6: memref<264x1xf32, #tpu.memory_space<vmem>>, %arg7: memref<1x8xf32, #tpu.memory_space<vmem>>) attributes {dimension_semantics = [#tpu.dimension_semantics<parallel>], iteration_bounds = array<i64: 1>, scalar_prefetch = 0 : i64, scratch_operands = 0 : i64, tpu.core_type = #tpu.core_type<tc>, window_params = [{transform_indices = @transform_0, window_bounds = array<i64: 3, 8>}, {pipeline_mode = #tpu.pipeline_mode<synchronous>, transform_indices = @transform_1, window_bounds = array<i64: 128, 3>}, {pipeline_mode = #tpu.pipeline_mode<synchronous>, transform_indices = @transform_2, window_bounds = array<i64: 64, 64>}, {pipeline_mode = #tpu.pipeline_mode<synchronous>, transform_indices = @transform_3, window_bounds = array<i64: 64, 64>}, {pipeline_mode = #tpu.pipeline_mode<synchronous>, transform_indices = @transform_4, window_bounds = array<i64: 1, 64>}, {pipeline_mode = #tpu.pipeline_mode<synchronous>, transform_indices = @transform_5, window_bounds = array<i64: 264, 1>}, {transform_indices = @transform_6, window_bounds = array<i64: 1, 8>}]} {
    %c0 = arith.constant 0 : index
    %c0_0 = arith.constant 0 : index
    %0 = vector.load %arg1[%c0, %c0_0] : memref<3x8xf32, #tpu.memory_space<vmem>>, vector<3x8xf32>
    %c0_1 = arith.constant 0 : index
    %c0_2 = arith.constant 0 : index
    %1 = vector.load %arg2[%c0_1, %c0_2] : memref<128x3xf32, #tpu.memory_space<vmem>>, vector<128x3xf32>
    %cst = arith.constant dense<0.000000e+00> : vector<128x8xf32>
    %2 = tpu.matmul %1, %0, %cst {dimension_numbers = #tpu.dot_dimension_numbers<[1], [0], [0], [1], [0, 0, 1, 1], [], []>} : vector<128x3xf32>, vector<3x8xf32>, vector<128x8xf32> -> vector<128x8xf32>
    %c0_3 = arith.constant 0 : index
    %c0_4 = arith.constant 0 : index
    %3 = vector.load %arg6[%c0_3, %c0_4] : memref<264x1xf32, #tpu.memory_space<vmem>>, vector<128x1xf32>
    %4 = vector.broadcast %3 : vector<128x1xf32> to vector<128x8xf32>
    %5 = arith.addf %2, %4 : vector<128x8xf32>
    %6 = vector.extract_strided_slice %5 {offsets = [0, 0], sizes = [64, 8], strides = [1, 1]} : vector<128x8xf32> to vector<64x8xf32>
    %cst_5 = arith.constant 0.000000e+00 : f32
    %7 = vector.broadcast %cst_5 : f32 to vector<64x8xf32>
    %8 = arith.maximumf %6, %7 : vector<64x8xf32>
    %9 = vector.extract_strided_slice %5 {offsets = [64, 0], sizes = [64, 8], strides = [1, 1]} : vector<128x8xf32> to vector<64x8xf32>
    %10 = arith.addf %8, %9 : vector<64x8xf32>
    %c0_6 = arith.constant 0 : index
    %c0_7 = arith.constant 0 : index
    %11 = vector.load %arg3[%c0_6, %c0_7] : memref<64x64xf32, #tpu.memory_space<vmem>>, vector<64x64xf32>
    %cst_8 = arith.constant dense<0.000000e+00> : vector<64x8xf32>
    %12 = tpu.matmul %11, %10, %cst_8 {dimension_numbers = #tpu.dot_dimension_numbers<[1], [0], [0], [1], [0, 0, 1, 1], [], []>} : vector<64x64xf32>, vector<64x8xf32>, vector<64x8xf32> -> vector<64x8xf32>
    %c128 = arith.constant 128 : index
    %c0_9 = arith.constant 0 : index
    %13 = vector.load %arg6[%c128, %c0_9] : memref<264x1xf32, #tpu.memory_space<vmem>>, vector<64x1xf32>
    %14 = vector.broadcast %13 : vector<64x1xf32> to vector<64x8xf32>
    %15 = arith.addf %12, %14 : vector<64x8xf32>
    %cst_10 = arith.constant 0.000000e+00 : f32
    %16 = vector.broadcast %cst_10 : f32 to vector<64x8xf32>
    %17 = arith.maximumf %15, %16 : vector<64x8xf32>
    %18 = arith.addf %17, %10 : vector<64x8xf32>
    %c0_11 = arith.constant 0 : index
    %c0_12 = arith.constant 0 : index
    %19 = vector.load %arg4[%c0_11, %c0_12] : memref<64x64xf32, #tpu.memory_space<vmem>>, vector<64x64xf32>
    %cst_13 = arith.constant dense<0.000000e+00> : vector<64x8xf32>
    %20 = tpu.matmul %19, %18, %cst_13 {dimension_numbers = #tpu.dot_dimension_numbers<[1], [0], [0], [1], [0, 0, 1, 1], [], []>} : vector<64x64xf32>, vector<64x8xf32>, vector<64x8xf32> -> vector<64x8xf32>
    %c192 = arith.constant 192 : index
    %c0_14 = arith.constant 0 : index
    %21 = vector.load %arg6[%c192, %c0_14] : memref<264x1xf32, #tpu.memory_space<vmem>>, vector<64x1xf32>
    %22 = vector.broadcast %21 : vector<64x1xf32> to vector<64x8xf32>
    %23 = arith.addf %20, %22 : vector<64x8xf32>
    %cst_15 = arith.constant 0.000000e+00 : f32
    %24 = vector.broadcast %cst_15 : f32 to vector<64x8xf32>
    %25 = arith.maximumf %23, %24 : vector<64x8xf32>
    %26 = arith.addf %25, %18 : vector<64x8xf32>
    %c0_16 = arith.constant 0 : index
    %c0_17 = arith.constant 0 : index
    %27 = vector.load %arg5[%c0_16, %c0_17] : memref<1x64xf32, #tpu.memory_space<vmem>>, vector<1x64xf32>
    %cst_18 = arith.constant dense<0.000000e+00> : vector<1x8xf32>
    %28 = tpu.matmul %27, %26, %cst_18 {dimension_numbers = #tpu.dot_dimension_numbers<[1], [0], [0], [1], [0, 0, 1, 1], [], []>} : vector<1x64xf32>, vector<64x8xf32>, vector<1x8xf32> -> vector<1x8xf32>
    %c256 = arith.constant 256 : index
    %c0_19 = arith.constant 0 : index
    %29 = vector.load %arg6[%c256, %c0_19] : memref<264x1xf32, #tpu.memory_space<vmem>>, vector<1x1xf32>
    %30 = vector.broadcast %29 : vector<1x1xf32> to vector<1x8xf32>
    %31 = arith.addf %28, %30 : vector<1x8xf32>
    %c0_20 = arith.constant 0 : index
    %c0_21 = arith.constant 0 : index
    %32 = vector.load %arg7[%c0_20, %c0_21] : memref<1x8xf32, #tpu.memory_space<vmem>>, vector<1x8xf32>
    tpu.vector_store %arg7[%c0_20, %c0_21], %31 {strides = array<i32>} : memref<1x8xf32, #tpu.memory_space<vmem>>, vector<1x8xf32>,
    return
  }
  func.func @transform_0(%arg0: i32) -> (i32, i32) {
    %c0_i32 = arith.constant 0 : i32
    %c0_i32_0 = arith.constant 0 : i32
    return %c0_i32, %arg0 : i32, i32
  }
  func.func @transform_1(%arg0: i32) -> (i32, i32) {
    %c0_i32 = arith.constant 0 : i32
    %c0_i32_0 = arith.constant 0 : i32
    %c0_i32_1 = arith.constant 0 : i32
    return %c0_i32, %c0_i32_0 : i32, i32
  }
  func.func @transform_2(%arg0: i32) -> (i32, i32) {
    %c0_i32 = arith.constant 0 : i32
    %c0_i32_0 = arith.constant 0 : i32
    %c0_i32_1 = arith.constant 0 : i32
    return %c0_i32, %c0_i32_0 : i32, i32
  }
  func.func @transform_3(%arg0: i32) -> (i32, i32) {
    %c0_i32 = arith.constant 0 : i32
    %c0_i32_0 = arith.constant 0 : i32
    %c0_i32_1 = arith.constant 0 : i32
    return %c0_i32, %c0_i32_0 : i32, i32
  }
  func.func @transform_4(%arg0: i32) -> (i32, i32) {
    %c0_i32 = arith.constant 0 : i32
    %c0_i32_0 = arith.constant 0 : i32
    %c0_i32_1 = arith.constant 0 : i32
    return %c0_i32, %c0_i32_0 : i32, i32
  }
  func.func @transform_5(%arg0: i32) -> (i32, i32) {
    %c0_i32 = arith.constant 0 : i32
    %c0_i32_0 = arith.constant 0 : i32
    %c0_i32_1 = arith.constant 0 : i32
    return %c0_i32, %c0_i32_0 : i32, i32
  }
  func.func @transform_6(%arg0: i32) -> (i32, i32) {
    %c0_i32 = arith.constant 0 : i32
    %c0_i32_0 = arith.constant 0 : i32
    return %c0_i32, %arg0 : i32, i32
  }
}

</mosaic_0001>

<llo_original>
// kernel: scatterplot_quality_regressor.1
$region0: #{scatterplot_quality_regressor.1}
  #allocation0 [shape = 'u32[]', space=smem, size = 0x4, offset = 0x4, fixed_abs, tag = 'smem constant byte address 0x4 - core index']
  #allocation1 [shape = 'u32[144,128]{1,0:T(1,128)}', space=vmem, size = 0x12000, scoped, tag = 'internal scratch']
  %s0 = inlined_call_operand.vmem [shape: f32[3,8], index: 0, kind: input, shape index: {}]
  %s1 = inlined_call_operand.vmem [shape: f32[128,3], index: 1, kind: input, shape index: {}]
  %s2 = inlined_call_operand.vmem [shape: f32[64,64], index: 2, kind: input, shape index: {}]
  %s3 = inlined_call_operand.vmem [shape: f32[64,64], index: 3, kind: input, shape index: {}]
  %s4 = inlined_call_operand.vmem [shape: f32[1,64], index: 4, kind: input, shape index: {}]
  %s5 = inlined_call_operand.vmem [shape: f32[264,1], index: 5, kind: input, shape index: {}]
  %s6 = inlined_call_operand.hbm [shape: f32[1,8], index: 6, kind: output, shape index: {}]
  %s7 = sld [smem:[#allocation0]]
  $region34: #{scatterplot_quality_regressor.1} parent=0
    _
  %s9 = ssub.s32 1, %s7
  %s10 = scalar_select 0, %s9, %s7
  $region1: #{scatterplot_quality_regressor.1} parent=0
    #allocation2 [shape = 'u8[512]{0}', space=vmem, size = 0x400, scoped, tag = 'output window, operand 0, single buffered']
    #allocation3 [shape = 's32[1]{0}', space=sflag, size = 0x4, scoped, tag = 'scoped memory for scatterplot_quality_regressor.1']
    %11 = vsyncpa [#allocation3], 0
    // Predicated region
    $region2: #{scatterplot_quality_regressor.1} parent=1 // pred_check
      _
    $region3: #{scatterplot_quality_regressor.1} parent=1 // pred_check_branch
      %13 = sbr.rel (0) target = $region5
    $region4: #{scatterplot_quality_regressor.1} parent=1 // pred_region
      _
    $region5: #{scatterplot_quality_regressor.1} parent=1 // pred_fallthru
      _
    // Predicated region
    $region6: #{scatterplot_quality_regressor.1} parent=1 // pred_check
      _
    $region7: #{scatterplot_quality_regressor.1} parent=1 // pred_check_branch
      %15 = sbr.rel (0) target = $region9
    $region8: #{scatterplot_quality_regressor.1} parent=1 // pred_region
      _
    $region9: #{scatterplot_quality_regressor.1} parent=1 // pred_fallthru
      _
    // Predicated region
    $region10: #{scatterplot_quality_regressor.1} parent=1 // pred_check
      _
    $region11: #{scatterplot_quality_regressor.1} parent=1 // pred_check_branch
      %17 = sbr.rel (0) target = $region13
    $region12: #{scatterplot_quality_regressor.1} parent=1 // pred_region
      _
    $region13: #{scatterplot_quality_regressor.1} parent=1 // pred_fallthru
      _
    // Predicated region
    $region14: #{scatterplot_quality_regressor.1} parent=1 // pred_check
      _
    $region15: #{scatterplot_quality_regressor.1} parent=1 // pred_check_branch
      %19 = sbr.rel (0) target = $region17
    $region16: #{scatterplot_quality_regressor.1} parent=1 // pred_region
      _
    $region17: #{scatterplot_quality_regressor.1} parent=1 // pred_fallthru
      _
    // Predicated region
    $region18: #{scatterplot_quality_regressor.1} parent=1 // pred_check
      _
    $region19: #{scatterplot_quality_regressor.1} parent=1 // pred_check_branch
      %21 = sbr.rel (0) target = $region21
    $region20: #{scatterplot_quality_regressor.1} parent=1 // pred_region
      _
    $region21: #{scatterplot_quality_regressor.1} parent=1 // pred_fallthru
      _
    // Predicated region
    $region22: #{scatterplot_quality_regressor.1} parent=1 // pred_check
      _
    $region23: #{scatterplot_quality_regressor.1} parent=1 // pred_check_branch
      %23 = sbr.rel (0) target = $region25
    $region24: #{scatterplot_quality_regressor.1} parent=1 // pred_region
      _
    $region25: #{scatterplot_quality_regressor.1} parent=1 // pred_fallthru
      _
    %v24 = vld [vmem:[%s0] sm:$0x7]
    %v25 = vld [vmem:[%s1] sm:$0xff]
    %v26 = vld [vmem:[%s1 + $0x8] sm:$0xff]
    %v27 = vld [vmem:[%s1 + $0x10] sm:$0xff]
    %v28 = vld [vmem:[%s1 + $0x18] sm:$0xff]
    %v29 = vld [vmem:[%s1 + $0x20] sm:$0xff]
    %v30 = vld [vmem:[%s1 + $0x28] sm:$0xff]
    %v31 = vld [vmem:[%s1 + $0x30] sm:$0xff]
    %v32 = vld [vmem:[%s1 + $0x38] sm:$0xff]
    %v33 = vld [vmem:[%s1 + $0x40] sm:$0xff]
    %v34 = vld [vmem:[%s1 + $0x48] sm:$0xff]
    %v35 = vld [vmem:[%s1 + $0x50] sm:$0xff]
    %v36 = vld [vmem:[%s1 + $0x58] sm:$0xff]
    %v37 = vld [vmem:[%s1 + $0x60] sm:$0xff]
    %v38 = vld [vmem:[%s1 + $0x68] sm:$0xff]
    %v39 = vld [vmem:[%s1 + $0x70] sm:$0xff]
    %v40 = vld [vmem:[%s1 + $0x78] sm:$0xff]
    %v41 = vld [vmem:[%s5] sm:$0xff]
    %v42 = vld [vmem:[%s5 + $0x8] sm:$0xff]
    %v43 = vld [vmem:[%s5 + $0x10] sm:$0xff]
    %v44 = vld [vmem:[%s5 + $0x18] sm:$0xff]
    %v45 = vld [vmem:[%s5 + $0x20] sm:$0xff]
    %v46 = vld [vmem:[%s5 + $0x28] sm:$0xff]
    %v47 = vld [vmem:[%s5 + $0x30] sm:$0xff]
    %v48 = vld [vmem:[%s5 + $0x38] sm:$0xff]
    %v49 = vld [vmem:[%s5 + $0x40] sm:$0xff]
    %v50 = vld [vmem:[%s5 + $0x48] sm:$0xff]
    %v51 = vld [vmem:[%s5 + $0x50] sm:$0xff]
    %v52 = vld [vmem:[%s5 + $0x58] sm:$0xff]
    %v53 = vld [vmem:[%s5 + $0x60] sm:$0xff]
    %v54 = vld [vmem:[%s5 + $0x68] sm:$0xff]
    %v55 = vld [vmem:[%s5 + $0x70] sm:$0xff]
    %v56 = vld [vmem:[%s5 + $0x78] sm:$0xff]
    %58 = vset.pattern.permute.xlu0 0
    %59 = vperm.xlu0 %58, %v41
    %v60 = vpop.permute.xlu0 %59
    %63 = vset.pattern.permute.xlu0 0
    %64 = vperm.xlu0 %63, %v42
    %v65 = vpop.permute.xlu0 %64
    %68 = vset.pattern.permute.xlu0 0
    %69 = vperm.xlu0 %68, %v43
    %v70 = vpop.permute.xlu0 %69
    %73 = vset.pattern.permute.xlu0 0
    %74 = vperm.xlu0 %73, %v44
    %v75 = vpop.permute.xlu0 %74
    %78 = vset.pattern.permute.xlu0 0
    %79 = vperm.xlu0 %78, %v45
    %v80 = vpop.permute.xlu0 %79
    %83 = vset.pattern.permute.xlu0 0
    %84 = vperm.xlu0 %83, %v46
    %v85 = vpop.permute.xlu0 %84
    %88 = vset.pattern.permute.xlu0 0
    %89 = vperm.xlu0 %88, %v47
    %v90 = vpop.permute.xlu0 %89
    %93 = vset.pattern.permute.xlu0 0
    %94 = vperm.xlu0 %93, %v48
    %v95 = vpop.permute.xlu0 %94
    %98 = vset.pattern.permute.xlu0 0
    %99 = vperm.xlu0 %98, %v49
    %v100 = vpop.permute.xlu0 %99
    %103 = vset.pattern.permute.xlu0 0
    %104 = vperm.xlu0 %103, %v50
    %v105 = vpop.permute.xlu0 %104
    %108 = vset.pattern.permute.xlu0 0
    %109 = vperm.xlu0 %108, %v51
    %v110 = vpop.permute.xlu0 %109
    %113 = vset.pattern.permute.xlu0 0
    %114 = vperm.xlu0 %113, %v52
    %v115 = vpop.permute.xlu0 %114
    %118 = vset.pattern.permute.xlu0 0
    %119 = vperm.xlu0 %118, %v53
    %v120 = vpop.permute.xlu0 %119
    %123 = vset.pattern.permute.xlu0 0
    %124 = vperm.xlu0 %123, %v54
    %v125 = vpop.permute.xlu0 %124
    %128 = vset.pattern.permute.xlu0 0
    %129 = vperm.xlu0 %128, %v55
    %v130 = vpop.permute.xlu0 %129
    %133 = vset.pattern.permute.xlu0 0
    %134 = vperm.xlu0 %133, %v56
    %v135 = vpop.permute.xlu0 %134
    %vm137 = vcmask 23552
    %v139 = vsel %vm137, %v25, 0
    %v142 = vsel %vm137, %v26, 0
    %v145 = vsel %vm137, %v27, 0
    %v148 = vsel %vm137, %v28, 0
    %v151 = vsel %vm137, %v29, 0
    %v154 = vsel %vm137, %v30, 0
    %v157 = vsel %vm137, %v31, 0
    %v160 = vsel %vm137, %v32, 0
    %v163 = vsel %vm137, %v33, 0
    %v166 = vsel %vm137, %v34, 0
    %v169 = vsel %vm137, %v35, 0
    %v172 = vsel %vm137, %v36, 0
    %v175 = vsel %vm137, %v37, 0
    %v178 = vsel %vm137, %v38, 0
    %v181 = vsel %vm137, %v39, 0
    %v184 = vsel %vm137, %v40, 0
    %vm186 = vcmask 1042432
    %v188 = vsel %vm186, %v24, 0
    %190 = vmatprep.subr.mxu0 0.0
    %191 = vmatpush1.msra.mxu0 %v188
    %192 = vmatprep.subr.mxu0 0.0
    %193 = vmatpush1.msra.mxu0 0.0
    %194 = vmatprep.subr.mxu0 0.0
    %195 = vmatpush1.msra.mxu0 0.0
    %196 = vmatprep.subr.mxu0 0.0
    %197 = vmatpush1.msra.mxu0 0.0
    %198 = vmatprep.subr.mxu0 0.0
    %199 = vmatpush1.msra.mxu0 0.0
    %200 = vmatprep.subr.mxu0 0.0
    %201 = vmatpush1.msra.mxu0 0.0
    %202 = vmatprep.subr.mxu0 0.0
    %203 = vmatpush1.msra.mxu0 0.0
    %204 = vmatprep.subr.mxu0 0.0
    %205 = vmatpush1.msra.mxu0 0.0
    %206 = vmatprep.subr.mxu0 0.0
    %207 = vmatpush1.msra.mxu0 0.0
    %208 = vmatprep.subr.mxu0 0.0
    %209 = vmatpush1.msra.mxu0 0.0
    %210 = vmatprep.subr.mxu0 0.0
    %211 = vmatpush1.msra.mxu0 0.0
    %212 = vmatprep.subr.mxu0 0.0
    %213 = vmatpush1.msra.mxu0 0.0
    %214 = vmatprep.subr.mxu0 0.0
    %215 = vmatpush1.msra.mxu0 0.0
    %216 = vmatprep.subr.mxu0 0.0
    %217 = vmatpush1.msra.mxu0 0.0
    %218 = vmatprep.subr.mxu0 0.0
    %219 = vmatpush1.msra.mxu0 0.0
    %220 = vmatprep.subr.mxu0 0.0
    %221 = vmatpush1.msra.mxu0 0.0
    %222 = vmatprep.subr.mxu0 0.0
    %223 = vmatpush1.msra.mxu0 0.0
    %224 = vmatprep.subr.mxu0 0.0
    %225 = vmatpush1.msra.mxu0 0.0
    %226 = vmatprep.subr.mxu0 0.0
    %227 = vmatpush1.msra.mxu0 0.0
    %228 = vmatprep.subr.mxu0 0.0
    %229 = vmatpush1.msra.mxu0 0.0
    %230 = vmatprep.subr.mxu0 0.0
    %231 = vmatpush1.msra.mxu0 0.0
    %232 = vmatprep.subr.mxu0 0.0
    %233 = vmatpush1.msra.mxu0 0.0
    %234 = vmatprep.subr.mxu0 0.0
    %235 = vmatpush1.msra.mxu0 0.0
    %236 = vmatprep.subr.mxu0 0.0
    %237 = vmatpush1.msra.mxu0 0.0
    %238 = vmatprep.subr.mxu0 0.0
    %239 = vmatpush1.msra.mxu0 0.0
    %240 = vmatprep.subr.mxu0 0.0
    %241 = vmatpush1.msra.mxu0 0.0
    %242 = vmatprep.subr.mxu0 0.0
    %243 = vmatpush1.msra.mxu0 0.0
    %244 = vmatprep.subr.mxu0 0.0
    %245 = vmatpush1.msra.mxu0 0.0
    %246 = vmatprep.subr.mxu0 0.0
    %247 = vmatpush1.msra.mxu0 0.0
    %248 = vmatprep.subr.mxu0 0.0
    %249 = vmatpush1.msra.mxu0 0.0
    %250 = vmatprep.subr.mxu0 0.0
    %251 = vmatpush1.msra.mxu0 0.0
    %252 = vmatprep.subr.mxu0 0.0
    %253 = vmatpush1.msra.mxu0 0.0
    %254 = vmatprep.mubr.f32.mxu0 0.0
    %255 = vmatmul.mubr.f32.gmra.mrb[0].mxu0 %v139
    %v256 = vpop.f32.mrb[0].mxu0
    %v257 = vadd.f32 %v60, %v256
    %v258 = vpop.f32.mrb[0].mxu0
    %259 = vmatprep.mubr.f32.mxu0 0.0
    %260 = vmatmul.mubr.f32.gmra.mrb[0].mxu0 %v142
    %v261 = vpop.f32.mrb[0].mxu0
    %v262 = vadd.f32 %v65, %v261
    %v263 = vpop.f32.mrb[0].mxu0
    %264 = vmatprep.mubr.f32.mxu0 0.0
    %265 = vmatmul.mubr.f32.gmra.mrb[0].mxu0 %v145
    %v266 = vpop.f32.mrb[0].mxu0
    %v267 = vadd.f32 %v70, %v266
    %v268 = vpop.f32.mrb[0].mxu0
    %269 = vmatprep.mubr.f32.mxu0 0.0
    %270 = vmatmul.mubr.f32.gmra.mrb[0].mxu0 %v148
    %v271 = vpop.f32.mrb[0].mxu0
    %v272 = vadd.f32 %v75, %v271
    %v273 = vpop.f32.mrb[0].mxu0
    %274 = vmatprep.mubr.f32.mxu0 0.0
    %275 = vmatmul.mubr.f32.gmra.mrb[0].mxu0 %v151
    %v276 = vpop.f32.mrb[0].mxu0
    %v277 = vadd.f32 %v80, %v276
    %v278 = vpop.f32.mrb[0].mxu0
    %279 = vmatprep.mubr.f32.mxu0 0.0
    %280 = vmatmul.mubr.f32.gmra.mrb[0].mxu0 %v154
    %v281 = vpop.f32.mrb[0].mxu0
    %v282 = vadd.f32 %v85, %v281
    %v283 = vpop.f32.mrb[0].mxu0
    %284 = vmatprep.mubr.f32.mxu0 0.0
    %285 = vmatmul.mubr.f32.gmra.mrb[0].mxu0 %v157
    %v286 = vpop.f32.mrb[0].mxu0
    %v287 = vadd.f32 %v90, %v286
    %v288 = vpop.f32.mrb[0].mxu0
    %289 = vmatprep.mubr.f32.mxu0 0.0
    %290 = vmatmul.mubr.f32.gmra.mrb[0].mxu0 %v160
    %v291 = vpop.f32.mrb[0].mxu0
    %v292 = vadd.f32 %v95, %v291
    %v293 = vpop.f32.mrb[0].mxu0
    %294 = vmatprep.mubr.f32.mxu0 0.0
    %295 = vmatmul.mubr.f32.gmra.mrb[0].mxu0 %v163
    %v296 = vpop.f32.mrb[0].mxu0
    %v297 = vadd.f32 %v100, %v296
    %v298 = vpop.f32.mrb[0].mxu0
    %299 = vmatprep.mubr.f32.mxu0 0.0
    %300 = vmatmul.mubr.f32.gmra.mrb[0].mxu0 %v166
    %v301 = vpop.f32.mrb[0].mxu0
    %v302 = vadd.f32 %v105, %v301
    %v303 = vpop.f32.mrb[0].mxu0
    %304 = vmatprep.mubr.f32.mxu0 0.0
    %305 = vmatmul.mubr.f32.gmra.mrb[0].mxu0 %v169
    %v306 = vpop.f32.mrb[0].mxu0
    %v307 = vadd.f32 %v110, %v306
    %v308 = vpop.f32.mrb[0].mxu0
    %309 = vmatprep.mubr.f32.mxu0 0.0
    %310 = vmatmul.mubr.f32.gmra.mrb[0].mxu0 %v172
    %v311 = vpop.f32.mrb[0].mxu0
    %v312 = vadd.f32 %v115, %v311
    %v313 = vpop.f32.mrb[0].mxu0
    %314 = vmatprep.mubr.f32.mxu0 0.0
    %315 = vmatmul.mubr.f32.gmra.mrb[0].mxu0 %v175
    %v316 = vpop.f32.mrb[0].mxu0
    %v317 = vadd.f32 %v120, %v316
    %v318 = vpop.f32.mrb[0].mxu0
    %319 = vmatprep.mubr.f32.mxu0 0.0
    %320 = vmatmul.mubr.f32.gmra.mrb[0].mxu0 %v178
    %v321 = vpop.f32.mrb[0].mxu0
    %v322 = vadd.f32 %v125, %v321
    %v323 = vpop.f32.mrb[0].mxu0
    %324 = vmatprep.mubr.f32.mxu0 0.0
    %325 = vmatmul.mubr.f32.gmra.mrb[0].mxu0 %v181
    %v326 = vpop.f32.mrb[0].mxu0
    %v327 = vadd.f32 %v130, %v326
    %v328 = vpop.f32.mrb[0].mxu0
    %329 = vmatprep.mubr.f32.mxu0 0.0
    %330 = vmatmul.mubr.f32.gmra.mrb[0].mxu0 %v184
    %v331 = vpop.f32.mrb[0].mxu0
    %v332 = vadd.f32 %v135, %v331
    %v333 = vpop.f32.mrb[0].mxu0
    %334 = vdwg.mxu0
    %v335 = vmax.f32 %v257, 0.0
    %v336 = vmax.f32 %v262, 0.0
    %v337 = vmax.f32 %v267, 0.0
    %v338 = vmax.f32 %v272, 0.0
    %v339 = vmax.f32 %v277, 0.0
    %v340 = vmax.f32 %v282, 0.0
    %v341 = vmax.f32 %v287, 0.0
    %v342 = vmax.f32 %v292, 0.0
    %v343 = vadd.f32 %v335, %v297
    %v344 = vadd.f32 %v336, %v302
    %v345 = vadd.f32 %v337, %v307
    %v346 = vadd.f32 %v338, %v312
    %v347 = vadd.f32 %v339, %v317
    %v348 = vadd.f32 %v340, %v322
    %v349 = vadd.f32 %v341, %v327
    %v350 = vadd.f32 %v342, %v332
    %v351 = vld [vmem:[%s2] sm:$0xff]
    %v352 = vld [vmem:[%s2 + $0x8] sm:$0xff]
    %v353 = vld [vmem:[%s2 + $0x10] sm:$0xff]
    %v354 = vld [vmem:[%s2 + $0x18] sm:$0xff]
    %v355 = vld [vmem:[%s2 + $0x20] sm:$0xff]
    %v356 = vld [vmem:[%s2 + $0x28] sm:$0xff]
    %v357 = vld [vmem:[%s2 + $0x30] sm:$0xff]
    %v358 = vld [vmem:[%s2 + $0x38] sm:$0xff]
    %v359 = vld [vmem:[%s5 + $0x80] sm:$0xff]
    %v360 = vld [vmem:[%s5 + $0x88] sm:$0xff]
    %v361 = vld [vmem:[%s5 + $0x90] sm:$0xff]
    %v362 = vld [vmem:[%s5 + $0x98] sm:$0xff]
    %v363 = vld [vmem:[%s5 + $0xa0] sm:$0xff]
    %v364 = vld [vmem:[%s5 + $0xa8] sm:$0xff]
    %v365 = vld [vmem:[%s5 + $0xb0] sm:$0xff]
    %v366 = vld [vmem:[%s5 + $0xb8] sm:$0xff]
    %368 = vset.pattern.permute.xlu0 0
    %369 = vperm.xlu0 %368, %v359
    %v370 = vpop.permute.xlu0 %369
    %373 = vset.pattern.permute.xlu0 0
    %374 = vperm.xlu0 %373, %v360
    %v375 = vpop.permute.xlu0 %374
    %378 = vset.pattern.permute.xlu0 0
    %379 = vperm.xlu0 %378, %v361
    %v380 = vpop.permute.xlu0 %379
    %383 = vset.pattern.permute.xlu0 0
    %384 = vperm.xlu0 %383, %v362
    %v385 = vpop.permute.xlu0 %384
    %388 = vset.pattern.permute.xlu0 0
    %389 = vperm.xlu0 %388, %v363
    %v390 = vpop.permute.xlu0 %389
    %393 = vset.pattern.permute.xlu0 0
    %394 = vperm.xlu0 %393, %v364
    %v395 = vpop.permute.xlu0 %394
    %398 = vset.pattern.permute.xlu0 0
    %399 = vperm.xlu0 %398, %v365
    %v400 = vpop.permute.xlu0 %399
    %403 = vset.pattern.permute.xlu0 0
    %404 = vperm.xlu0 %403, %v366
    %v405 = vpop.permute.xlu0 %404
    %vm407 = vcmask 523264
    %v409 = vsel %vm407, %v351, 0
    %v412 = vsel %vm407, %v352, 0
    %v415 = vsel %vm407, %v353, 0
    %v418 = vsel %vm407, %v354, 0
    %v421 = vsel %vm407, %v355, 0
    %v424 = vsel %vm407, %v356, 0
    %v427 = vsel %vm407, %v357, 0
    %v430 = vsel %vm407, %v358, 0
    %432 = vmatprep.subr.mxu0 0.0
    %433 = vmatpush1.msra.mxu0 %v343
    %434 = vmatprep.subr.mxu0 0.0
    %435 = vmatpush1.msra.mxu0 %v344
    %436 = vmatprep.subr.mxu0 0.0
    %437 = vmatpush1.msra.mxu0 %v345
    %438 = vmatprep.subr.mxu0 0.0
    %439 = vmatpush1.msra.mxu0 %v346
    %440 = vmatprep.subr.mxu0 0.0
    %441 = vmatpush1.msra.mxu0 %v347
    %442 = vmatprep.subr.mxu0 0.0
    %443 = vmatpush1.msra.mxu0 %v348
    %444 = vmatprep.subr.mxu0 0.0
    %445 = vmatpush1.msra.mxu0 %v349
    %446 = vmatprep.subr.mxu0 0.0
    %447 = vmatpush1.msra.mxu0 %v350
    %448 = vmatprep.subr.mxu0 0.0
    %449 = vmatpush1.msra.mxu0 0.0
    %450 = vmatprep.subr.mxu0 0.0
    %451 = vmatpush1.msra.mxu0 0.0
    %452 = vmatprep.subr.mxu0 0.0
    %453 = vmatpush1.msra.mxu0 0.0
    %454 = vmatprep.subr.mxu0 0.0
    %455 = vmatpush1.msra.mxu0 0.0
    %456 = vmatprep.subr.mxu0 0.0
    %457 = vmatpush1.msra.mxu0 0.0
    %458 = vmatprep.subr.mxu0 0.0
    %459 = vmatpush1.msra.mxu0 0.0
    %460 = vmatprep.subr.mxu0 0.0
    %461 = vmatpush1.msra.mxu0 0.0
    %462 = vmatprep.subr.mxu0 0.0
    %463 = vmatpush1.msra.mxu0 0.0
    %464 = vmatprep.subr.mxu0 0.0
    %465 = vmatpush1.msra.mxu0 0.0
    %466 = vmatprep.subr.mxu0 0.0
    %467 = vmatpush1.msra.mxu0 0.0
    %468 = vmatprep.subr.mxu0 0.0
    %469 = vmatpush1.msra.mxu0 0.0
    %470 = vmatprep.subr.mxu0 0.0
    %471 = vmatpush1.msra.mxu0 0.0
    %472 = vmatprep.subr.mxu0 0.0
    %473 = vmatpush1.msra.mxu0 0.0
    %474 = vmatprep.subr.mxu0 0.0
    %475 = vmatpush1.msra.mxu0 0.0
    %476 = vmatprep.subr.mxu0 0.0
    %477 = vmatpush1.msra.mxu0 0.0
    %478 = vmatprep.subr.mxu0 0.0
    %479 = vmatpush1.msra.mxu0 0.0
    %480 = vmatprep.subr.mxu0 0.0
    %481 = vmatpush1.msra.mxu0 0.0
    %482 = vmatprep.subr.mxu0 0.0
    %483 = vmatpush1.msra.mxu0 0.0
    %484 = vmatprep.subr.mxu0 0.0
    %485 = vmatpush1.msra.mxu0 0.0
    %486 = vmatprep.subr.mxu0 0.0
    %487 = vmatpush1.msra.mxu0 0.0
    %488 = vmatprep.subr.mxu0 0.0
    %489 = vmatpush1.msra.mxu0 0.0
    %490 = vmatprep.subr.mxu0 0.0
    %491 = vmatpush1.msra.mxu0 0.0
    %492 = vmatprep.subr.mxu0 0.0
    %493 = vmatpush1.msra.mxu0 0.0
    %494 = vmatprep.subr.mxu0 0.0
    %495 = vmatpush1.msra.mxu0 0.0
    %496 = vmatprep.mubr.f32.mxu0 0.0
    %497 = vmatmul.mubr.f32.gmra.mrb[0].mxu0 %v409
    %v498 = vpop.f32.mrb[0].mxu0
    %v499 = vadd.f32 %v370, %v498
    %v500 = vpop.f32.mrb[0].mxu0
    %501 = vmatprep.mubr.f32.mxu0 0.0
    %502 = vmatmul.mubr.f32.gmra.mrb[0].mxu0 %v412
    %v503 = vpop.f32.mrb[0].mxu0
    %v504 = vadd.f32 %v375, %v503
    %v505 = vpop.f32.mrb[0].mxu0
    %506 = vmatprep.mubr.f32.mxu0 0.0
    %507 = vmatmul.mubr.f32.gmra.mrb[0].mxu0 %v415
    %v508 = vpop.f32.mrb[0].mxu0
    %v509 = vadd.f32 %v380, %v508
    %v510 = vpop.f32.mrb[0].mxu0
    %511 = vmatprep.mubr.f32.mxu0 0.0
    %512 = vmatmul.mubr.f32.gmra.mrb[0].mxu0 %v418
    %v513 = vpop.f32.mrb[0].mxu0
    %v514 = vadd.f32 %v385, %v513
    %v515 = vpop.f32.mrb[0].mxu0
    %516 = vmatprep.mubr.f32.mxu0 0.0
    %517 = vmatmul.mubr.f32.gmra.mrb[0].mxu0 %v421
    %v518 = vpop.f32.mrb[0].mxu0
    %v519 = vadd.f32 %v390, %v518
    %v520 = vpop.f32.mrb[0].mxu0
    %521 = vmatprep.mubr.f32.mxu0 0.0
    %522 = vmatmul.mubr.f32.gmra.mrb[0].mxu0 %v424
    %v523 = vpop.f32.mrb[0].mxu0
    %v524 = vadd.f32 %v395, %v523
    %v525 = vpop.f32.mrb[0].mxu0
    %526 = vmatprep.mubr.f32.mxu0 0.0
    %527 = vmatmul.mubr.f32.gmra.mrb[0].mxu0 %v427
    %v528 = vpop.f32.mrb[0].mxu0
    %v529 = vadd.f32 %v400, %v528
    %v530 = vpop.f32.mrb[0].mxu0
    %531 = vmatprep.mubr.f32.mxu0 0.0
    %532 = vmatmul.mubr.f32.gmra.mrb[0].mxu0 %v430
    %v533 = vpop.f32.mrb[0].mxu0
    %v534 = vadd.f32 %v405, %v533
    %v535 = vpop.f32.mrb[0].mxu0
    %536 = vdwg.mxu0
    %v537 = vmax.f32 %v499, 0.0
    %v538 = vmax.f32 %v504, 0.0
    %v539 = vmax.f32 %v509, 0.0
    %v540 = vmax.f32 %v514, 0.0
    %v541 = vmax.f32 %v519, 0.0
    %v542 = vmax.f32 %v524, 0.0
    %v543 = vmax.f32 %v529, 0.0
    %v544 = vmax.f32 %v534, 0.0
    %v545 = vadd.f32 %v537, %v343
    %v546 = vadd.f32 %v538, %v344
    %v547 = vadd.f32 %v539, %v345
    %v548 = vadd.f32 %v540, %v346
    %v549 = vadd.f32 %v541, %v347
    %v550 = vadd.f32 %v542, %v348
    %v551 = vadd.f32 %v543, %v349
    %v552 = vadd.f32 %v544, %v350
    %v553 = vld [vmem:[%s3] sm:$0xff]
    %v554 = vld [vmem:[%s3 + $0x8] sm:$0xff]
    %v555 = vld [vmem:[%s3 + $0x10] sm:$0xff]
    %v556 = vld [vmem:[%s3 + $0x18] sm:$0xff]
    %v557 = vld [vmem:[%s3 + $0x20] sm:$0xff]
    %v558 = vld [vmem:[%s3 + $0x28] sm:$0xff]
    %v559 = vld [vmem:[%s3 + $0x30] sm:$0xff]
    %v560 = vld [vmem:[%s3 + $0x38] sm:$0xff]
    %v561 = vld [vmem:[%s5 + $0xc0] sm:$0xff]
    %v562 = vld [vmem:[%s5 + $0xc8] sm:$0xff]
    %v563 = vld [vmem:[%s5 + $0xd0] sm:$0xff]
    %v564 = vld [vmem:[%s5 + $0xd8] sm:$0xff]
    %v565 = vld [vmem:[%s5 + $0xe0] sm:$0xff]
    %v566 = vld [vmem:[%s5 + $0xe8] sm:$0xff]
    %v567 = vld [vmem:[%s5 + $0xf0] sm:$0xff]
    %v568 = vld [vmem:[%s5 + $0xf8] sm:$0xff]
    %570 = vset.pattern.permute.xlu0 0
    %571 = vperm.xlu0 %570, %v561
    %v572 = vpop.permute.xlu0 %571
    %575 = vset.pattern.permute.xlu0 0
    %576 = vperm.xlu0 %575, %v562
    %v577 = vpop.permute.xlu0 %576
    %580 = vset.pattern.permute.xlu0 0
    %581 = vperm.xlu0 %580, %v563
    %v582 = vpop.permute.xlu0 %581
    %585 = vset.pattern.permute.xlu0 0
    %586 = vperm.xlu0 %585, %v564
    %v587 = vpop.permute.xlu0 %586
    %590 = vset.pattern.permute.xlu0 0
    %591 = vperm.xlu0 %590, %v565
    %v592 = vpop.permute.xlu0 %591
    %595 = vset.pattern.permute.xlu0 0
    %596 = vperm.xlu0 %595, %v566
    %v597 = vpop.permute.xlu0 %596
    %600 = vset.pattern.permute.xlu0 0
    %601 = vperm.xlu0 %600, %v567
    %v602 = vpop.permute.xlu0 %601
    %605 = vset.pattern.permute.xlu0 0
    %606 = vperm.xlu0 %605, %v568
    %v607 = vpop.permute.xlu0 %606
    %v610 = vsel %vm407, %v553, 0
    %v613 = vsel %vm407, %v554, 0
    %v616 = vsel %vm407, %v555, 0
    %v619 = vsel %vm407, %v556, 0
    %v622 = vsel %vm407, %v557, 0
    %v625 = vsel %vm407, %v558, 0
    %v628 = vsel %vm407, %v559, 0
    %v631 = vsel %vm407, %v560, 0
    %633 = vmatprep.subr.mxu0 0.0
    %634 = vmatpush1.msra.mxu0 %v545
    %635 = vmatprep.subr.mxu0 0.0
    %636 = vmatpush1.msra.mxu0 %v546
    %637 = vmatprep.subr.mxu0 0.0
    %638 = vmatpush1.msra.mxu0 %v547
    %639 = vmatprep.subr.mxu0 0.0
    %640 = vmatpush1.msra.mxu0 %v548
    %641 = vmatprep.subr.mxu0 0.0
    %642 = vmatpush1.msra.mxu0 %v549
    %643 = vmatprep.subr.mxu0 0.0
    %644 = vmatpush1.msra.mxu0 %v550
    %645 = vmatprep.subr.mxu0 0.0
    %646 = vmatpush1.msra.mxu0 %v551
    %647 = vmatprep.subr.mxu0 0.0
    %648 = vmatpush1.msra.mxu0 %v552
    %649 = vmatprep.subr.mxu0 0.0
    %650 = vmatpush1.msra.mxu0 0.0
    %651 = vmatprep.subr.mxu0 0.0
    %652 = vmatpush1.msra.mxu0 0.0
    %653 = vmatprep.subr.mxu0 0.0
    %654 = vmatpush1.msra.mxu0 0.0
    %655 = vmatprep.subr.mxu0 0.0
    %656 = vmatpush1.msra.mxu0 0.0
    %657 = vmatprep.subr.mxu0 0.0
    %658 = vmatpush1.msra.mxu0 0.0
    %659 = vmatprep.subr.mxu0 0.0
    %660 = vmatpush1.msra.mxu0 0.0
    %661 = vmatprep.subr.mxu0 0.0
    %662 = vmatpush1.msra.mxu0 0.0
    %663 = vmatprep.subr.mxu0 0.0
    %664 = vmatpush1.msra.mxu0 0.0
    %665 = vmatprep.subr.mxu0 0.0
    %666 = vmatpush1.msra.mxu0 0.0
    %667 = vmatprep.subr.mxu0 0.0
    %668 = vmatpush1.msra.mxu0 0.0
    %669 = vmatprep.subr.mxu0 0.0
    %670 = vmatpush1.msra.mxu0 0.0
    %671 = vmatprep.subr.mxu0 0.0
    %672 = vmatpush1.msra.mxu0 0.0
    %673 = vmatprep.subr.mxu0 0.0
    %674 = vmatpush1.msra.mxu0 0.0
    %675 = vmatprep.subr.mxu0 0.0
    %676 = vmatpush1.msra.mxu0 0.0
    %677 = vmatprep.subr.mxu0 0.0
    %678 = vmatpush1.msra.mxu0 0.0
    %679 = vmatprep.subr.mxu0 0.0
    %680 = vmatpush1.msra.mxu0 0.0
    %681 = vmatprep.subr.mxu0 0.0
    %682 = vmatpush1.msra.mxu0 0.0
    %683 = vmatprep.subr.mxu0 0.0
    %684 = vmatpush1.msra.mxu0 0.0
    %685 = vmatprep.subr.mxu0 0.0
    %686 = vmatpush1.msra.mxu0 0.0
    %687 = vmatprep.subr.mxu0 0.0
    %688 = vmatpush1.msra.mxu0 0.0
    %689 = vmatprep.subr.mxu0 0.0
    %690 = vmatpush1.msra.mxu0 0.0
    %691 = vmatprep.subr.mxu0 0.0
    %692 = vmatpush1.msra.mxu0 0.0
    %693 = vmatprep.subr.mxu0 0.0
    %694 = vmatpush1.msra.mxu0 0.0
    %695 = vmatprep.subr.mxu0 0.0
    %696 = vmatpush1.msra.mxu0 0.0
    %697 = vmatprep.mubr.f32.mxu0 0.0
    %698 = vmatmul.mubr.f32.gmra.mrb[0].mxu0 %v610
    %v699 = vpop.f32.mrb[0].mxu0
    %v700 = vadd.f32 %v572, %v699
    %v701 = vpop.f32.mrb[0].mxu0
    %702 = vmatprep.mubr.f32.mxu0 0.0
    %703 = vmatmul.mubr.f32.gmra.mrb[0].mxu0 %v613
    %v704 = vpop.f32.mrb[0].mxu0
    %v705 = vadd.f32 %v577, %v704
    %v706 = vpop.f32.mrb[0].mxu0
    %707 = vmatprep.mubr.f32.mxu0 0.0
    %708 = vmatmul.mubr.f32.gmra.mrb[0].mxu0 %v616
    %v709 = vpop.f32.mrb[0].mxu0
    %v710 = vadd.f32 %v582, %v709
    %v711 = vpop.f32.mrb[0].mxu0
    %712 = vmatprep.mubr.f32.mxu0 0.0
    %713 = vmatmul.mubr.f32.gmra.mrb[0].mxu0 %v619
    %v714 = vpop.f32.mrb[0].mxu0
    %v715 = vadd.f32 %v587, %v714
    %v716 = vpop.f32.mrb[0].mxu0
    %717 = vmatprep.mubr.f32.mxu0 0.0
    %718 = vmatmul.mubr.f32.gmra.mrb[0].mxu0 %v622
    %v719 = vpop.f32.mrb[0].mxu0
    %v720 = vadd.f32 %v592, %v719
    %v721 = vpop.f32.mrb[0].mxu0
    %722 = vmatprep.mubr.f32.mxu0 0.0
    %723 = vmatmul.mubr.f32.gmra.mrb[0].mxu0 %v625
    %v724 = vpop.f32.mrb[0].mxu0
    %v725 = vadd.f32 %v597, %v724
    %v726 = vpop.f32.mrb[0].mxu0
    %727 = vmatprep.mubr.f32.mxu0 0.0
    %728 = vmatmul.mubr.f32.gmra.mrb[0].mxu0 %v628
    %v729 = vpop.f32.mrb[0].mxu0
    %v730 = vadd.f32 %v602, %v729
    %v731 = vpop.f32.mrb[0].mxu0
    %732 = vmatprep.mubr.f32.mxu0 0.0
    %733 = vmatmul.mubr.f32.gmra.mrb[0].mxu0 %v631
    %v734 = vpop.f32.mrb[0].mxu0
    %v735 = vadd.f32 %v607, %v734
    %v736 = vpop.f32.mrb[0].mxu0
    %737 = vdwg.mxu0
    %v738 = vmax.f32 %v700, 0.0
    %v739 = vmax.f32 %v705, 0.0
    %v740 = vmax.f32 %v710, 0.0
    %v741 = vmax.f32 %v715, 0.0
    %v742 = vmax.f32 %v720, 0.0
    %v743 = vmax.f32 %v725, 0.0
    %v744 = vmax.f32 %v730, 0.0
    %v745 = vmax.f32 %v735, 0.0
    %v746 = vadd.f32 %v738, %v545
    %v747 = vadd.f32 %v739, %v546
    %v748 = vadd.f32 %v740, %v547
    %v749 = vadd.f32 %v741, %v548
    %v750 = vadd.f32 %v742, %v549
    %v751 = vadd.f32 %v743, %v550
    %v752 = vadd.f32 %v744, %v551
    %v753 = vadd.f32 %v745, %v552
    %v754 = vld [vmem:[%s4] sm:$0x1]
    %v755 = vld [vmem:[%s5 + $0x100] sm:$0x1]
    %757 = vset.pattern.permute.xlu0 0
    %758 = vperm.xlu0 %757, %v755
    %v759 = vpop.permute.xlu0 %758
    %v762 = vsel %vm407, %v754, 0
    %764 = vmatprep.subr.mxu0 0.0
    %765 = vmatpush1.msra.mxu0 %v746
    %766 = vmatprep.subr.mxu0 0.0
    %767 = vmatpush1.msra.mxu0 %v747
    %768 = vmatprep.subr.mxu0 0.0
    %769 = vmatpush1.msra.mxu0 %v748
    %770 = vmatprep.subr.mxu0 0.0
    %771 = vmatpush1.msra.mxu0 %v749
    %772 = vmatprep.subr.mxu0 0.0
    %773 = vmatpush1.msra.mxu0 %v750
    %774 = vmatprep.subr.mxu0 0.0
    %775 = vmatpush1.msra.mxu0 %v751
    %776 = vmatprep.subr.mxu0 0.0
    %777 = vmatpush1.msra.mxu0 %v752
    %778 = vmatprep.subr.mxu0 0.0
    %779 = vmatpush1.msra.mxu0 %v753
    %780 = vmatprep.subr.mxu0 0.0
    %781 = vmatpush1.msra.mxu0 0.0
    %782 = vmatprep.subr.mxu0 0.0
    %783 = vmatpush1.msra.mxu0 0.0
    %784 = vmatprep.subr.mxu0 0.0
    %785 = vmatpush1.msra.mxu0 0.0
    %786 = vmatprep.subr.mxu0 0.0
    %787 = vmatpush1.msra.mxu0 0.0
    %788 = vmatprep.subr.mxu0 0.0
    %789 = vmatpush1.msra.mxu0 0.0
    %790 = vmatprep.subr.mxu0 0.0
    %791 = vmatpush1.msra.mxu0 0.0
    %792 = vmatprep.subr.mxu0 0.0
    %793 = vmatpush1.msra.mxu0 0.0
    %794 = vmatprep.subr.mxu0 0.0
    %795 = vmatpush1.msra.mxu0 0.0
    %796 = vmatprep.subr.mxu0 0.0
    %797 = vmatpush1.msra.mxu0 0.0
    %798 = vmatprep.subr.mxu0 0.0
    %799 = vmatpush1.msra.mxu0 0.0
    %800 = vmatprep.subr.mxu0 0.0
    %801 = vmatpush1.msra.mxu0 0.0
    %802 = vmatprep.subr.mxu0 0.0
    %803 = vmatpush1.msra.mxu0 0.0
    %804 = vmatprep.subr.mxu0 0.0
    %805 = vmatpush1.msra.mxu0 0.0
    %806 = vmatprep.subr.mxu0 0.0
    %807 = vmatpush1.msra.mxu0 0.0
    %808 = vmatprep.subr.mxu0 0.0
    %809 = vmatpush1.msra.mxu0 0.0
    %810 = vmatprep.subr.mxu0 0.0
    %811 = vmatpush1.msra.mxu0 0.0
    %812 = vmatprep.subr.mxu0 0.0
    %813 = vmatpush1.msra.mxu0 0.0
    %814 = vmatprep.subr.mxu0 0.0
    %815 = vmatpush1.msra.mxu0 0.0
    %816 = vmatprep.subr.mxu0 0.0
    %817 = vmatpush1.msra.mxu0 0.0
    %818 = vmatprep.subr.mxu0 0.0
    %819 = vmatpush1.msra.mxu0 0.0
    %820 = vmatprep.subr.mxu0 0.0
    %821 = vmatpush1.msra.mxu0 0.0
    %822 = vmatprep.subr.mxu0 0.0
    %823 = vmatpush1.msra.mxu0 0.0
    %824 = vmatprep.subr.mxu0 0.0
    %825 = vmatpush1.msra.mxu0 0.0
    %826 = vmatprep.subr.mxu0 0.0
    %827 = vmatpush1.msra.mxu0 0.0
    %828 = vmatprep.mubr.f32.mxu0 0.0
    %829 = vmatmul.mubr.f32.gmra.mrb[0].mxu0 %v762
    %v830 = vpop.f32.mrb[0].mxu0
    %v831 = vadd.f32 %v759, %v830
    %v832 = vpop.f32.mrb[0].mxu0
    %833 = vdwg.mxu0
    %vm834 = vcmask 57344
    %835 = vst.msk [vmem:[#allocation2] sm:$0x1] %vm834, %v831
    // Predicated region
    $region26: #{scatterplot_quality_regressor.1} parent=1 // pred_check
      _
    $region27: #{scatterplot_quality_regressor.1} parent=1 // pred_check_branch
      %837 = sbr.rel (0) target = $region29
    $region28: #{scatterplot_quality_regressor.1} parent=1 // pred_region
      %s839 = ssub.s32 16, 16
      %840 = vsyncadd [#allocation3], %s839
      %s842 = sshll.u32 [#allocation2], 4
      %s843 = int_to_ptr.vmem [resolvable:$true] %s842
      %845 = dma.vmem_to_hbm [thread:$0]  %s843, 16, %s6, [#allocation3]
    $region29: #{scatterplot_quality_regressor.1} parent=1 // pred_fallthru
      _
    // Predicated region
    $region30: #{scatterplot_quality_regressor.1} parent=1 // pred_check
      _
    $region31: #{scatterplot_quality_regressor.1} parent=1 // pred_check_branch
      %847 = sbr.rel (0) target = $region33
    $region32: #{scatterplot_quality_regressor.1} parent=1 // pred_region
      %848 = dma.done [#allocation3], 16
    $region33: #{scatterplot_quality_regressor.1} parent=1 // pred_fallthru
      _
    %849 = vsyncpa [#allocation3], 1

</llo_original>
